<compile_context>
chip_gen: v5e
topology: v5e:2x2
jax: 0.10.0
libtpu: 0.0.40
codegen_flags: <defaults>
</compile_context>

<pallas_src>
import math

import jax
import jax.numpy as jnp
from jax.experimental import pallas as pl
from jax.experimental.pallas import tpu as pltpu


def _mlstmf_seq_kernel(x_ref, wx_ref, wh_ref, b_ref, negw_ref, h0_ref, c0_ref,
                       hseq_ref, cells_ref, h_scr):
    """One grid step == one RNN timestep.

    State (hidden + k-deep cell history) stays resident in VMEM across the
    whole sequence; weights are fetched once (constant index_map) and reused.
    """
    t = pl.program_id(0)
    k = cells_ref.shape[0]
    hidden = h_scr.shape[1]

    # Load the initial state into the resident buffers on the first step.
    @pl.when(t == 0)
    def _():
        h_scr[...] = h0_ref[...]
        cells_ref[...] = c0_ref[...]

    x = x_ref[0]                            # (B, I)
    h = h_scr[...]                          # (B, H)

    # Fused gate pre-activations: one (B, 3H) slab.  Gate order: [i | o | c~].
    z = (jnp.dot(x, wx_ref[...], preferred_element_type=jnp.float32)
         + jnp.dot(h, wh_ref[...], preferred_element_type=jnp.float32)
         + b_ref[...])                      # (B, 3H)
    i_gate = jax.nn.sigmoid(z[:, :hidden])
    o_gate = jax.nn.sigmoid(z[:, hidden:2 * hidden])
    c_tilde = jnp.tanh(z[:, 2 * hidden:])
    gated_c_tilde = i_gate * c_tilde        # (B, H)

    # History-weighted cell reduction; negation already folded into negw.
    # torch.einsum('ijk,ik->ijk', [-cells, w]).sum(0) == sum_i cells[i]*(-w[i])
    cells = cells_ref[...]                  # (k, B, H)
    weighted_his_cell = cells[0] * negw_ref[0]
    for i in range(1, k):
        weighted_his_cell = weighted_his_cell + cells[i] * negw_ref[i]

    cell_new = weighted_his_cell + gated_c_tilde        # (B, H)
    h_new = jnp.tanh(cell_new) * o_gate                 # (B, H)

    # Per-step hidden output + resident state update.
    hseq_ref[0] = h_new.astype(hseq_ref.dtype)
    h_scr[...] = h_new

    # Shift-in of cell_new (drop the oldest history slab), done fully in VMEM.
    for i in range(k - 1):
        cells_ref[i] = cells[i + 1]
    cells_ref[k - 1] = cell_new.astype(cells_ref.dtype)


def mlstmf_sequence_forward(x_seq, hiddens_all, hist_weights, params,
                            *, k, hidden_size):
    """Run MLSTMFCell over a whole (T, B, I) sequence in ONE pallas_call.

    Returns (h_seq [T,B,H], final_cell_tensors [k,B,H]).  Each step matches
    MLSTMFCell.forward exactly.
    """
    seq_len, batch, input_size = x_seq.shape
    dtype = x_seq.dtype

    if hiddens_all is None:
        h0 = jnp.zeros((batch, hidden_size), dtype=dtype)
        c0 = jnp.zeros((k, batch, hidden_size), dtype=dtype)
    else:
        h0, c0 = hiddens_all

    # Fuse the 3 gate Linears into one (.., 3H) weight; split the x / h halves
    # so no concat([x, h]) is needed per step inside the kernel.
    wx = jnp.concatenate([params["wi"][:input_size],
                          params["wo"][:input_size],
                          params["wc"][:input_size]], axis=1)    # (I, 3H)
    wh = jnp.concatenate([params["wi"][input_size:],
                          params["wo"][input_size:],
                          params["wc"][input_size:]], axis=1)    # (H, 3H)
    b = jnp.concatenate([params["bi"], params["bo"], params["bc"]],
                        axis=1)                                  # (1, 3H)
    neg_hwts = (-hist_weights).reshape(k, 1, hidden_size)        # (k, 1, H)

    h3 = 3 * hidden_size
    cost = pl.CostEstimate(
        flops=int(2 * seq_len * batch * (input_size + hidden_size) * h3
                  + 8 * seq_len * batch * hidden_size * k),
        transcendentals=int(4 * seq_len * batch * hidden_size),
        bytes_accessed=int(4 * (seq_len * batch * (input_size + hidden_size)
                                + (input_size + hidden_size) * h3 + h3
                                + k * hidden_size
                                + 2 * k * batch * hidden_size
                                + batch * hidden_size)),
    )

    h_seq, cells_out = pl.pallas_call(
        _mlstmf_seq_kernel,
        grid=(seq_len,),
        in_specs=[
            pl.BlockSpec((1, batch, input_size), lambda t: (t, 0, 0)),   # x_t
            pl.BlockSpec((input_size, h3), lambda t: (0, 0)),            # wx
            pl.BlockSpec((hidden_size, h3), lambda t: (0, 0)),           # wh
            pl.BlockSpec((1, h3), lambda t: (0, 0)),                     # bias
            pl.BlockSpec((k, 1, hidden_size), lambda t: (0, 0, 0)),      # -w
            pl.BlockSpec((batch, hidden_size), lambda t: (0, 0)),        # h0
            pl.BlockSpec((k, batch, hidden_size), lambda t: (0, 0, 0)),  # c0
        ],
        out_specs=(
            pl.BlockSpec((1, batch, hidden_size), lambda t: (t, 0, 0)),  # h_t
            pl.BlockSpec((k, batch, hidden_size), lambda t: (0, 0, 0)),  # cells
        ),
        out_shape=(
            jax.ShapeDtypeStruct((seq_len, batch, hidden_size), dtype),
            jax.ShapeDtypeStruct((k, batch, hidden_size), dtype),
        ),
        scratch_shapes=[pltpu.VMEM((batch, hidden_size), jnp.float32)],
        compiler_params=pltpu.CompilerParams(
            dimension_semantics=("arbitrary",)),
        cost_estimate=cost,
    )(x_seq, wx, wh, b, neg_hwts, h0, c0)
    return h_seq, cells_out


def mlstmf_cell_forward(sample, hiddens_all, hist_weights, params,
                        *, k, hidden_size):
    """Pallas-backed equivalent of MLSTMFCell.forward (single step)."""
    h_seq, cells_out = mlstmf_sequence_forward(
        sample[None], hiddens_all, hist_weights, params,
        k=k, hidden_size=hidden_size)
    return h_seq[0], cells_out


# ----------------------------- pure-JAX reference -----------------------------


def _ref_forward(sample, hiddens_all, hist_weights, params, *, k, hidden_size):
    """Pure-JAX reference mirroring the PyTorch forward exactly."""
    batch = sample.shape[0]
    dtype = sample.dtype
    if hiddens_all is None:
        hidden_state = jnp.zeros((batch, hidden_size), dtype=dtype)
        cell_tensors = jnp.zeros((k, batch, hidden_size), dtype=dtype)
    else:
        hidden_state, cell_tensors = hiddens_all
    xh = jnp.concatenate([sample, hidden_state], axis=1)
    i_gate = jax.nn.sigmoid(xh @ params["wi"] + params["bi"])
    o_gate = jax.nn.sigmoid(xh @ params["wo"] + params["bo"])
    c_tilde = jnp.tanh(xh @ params["wc"] + params["bc"])
    gated_c_tilde = i_gate * c_tilde
    weighted_his_cell = jnp.einsum("ijk,ik->ijk",
                                   -cell_tensors, hist_weights).sum(axis=0)
    cell_new = weighted_his_cell + gated_c_tilde
    all_cells = jnp.concatenate([cell_tensors, cell_new[None]], axis=0)
    updated = all_cells[1:]
    h_new = jnp.tanh(cell_new) * o_gate
    return h_new, updated


def _ref_sequence(x_seq, hiddens_all, hist_weights, params, *, k, hidden_size):
    batch = x_seq.shape[1]
    dtype = x_seq.dtype
    if hiddens_all is None:
        h = jnp.zeros((batch, hidden_size), dtype=dtype)
        cells = jnp.zeros((k, batch, hidden_size), dtype=dtype)
    else:
        h, cells = hiddens_all
    hs = []
    for t in range(x_seq.shape[0]):
        h, cells = _ref_forward(x_seq[t], (h, cells), hist_weights, params,
                                k=k, hidden_size=hidden_size)
        hs.append(h)
    return jnp.stack(hs, axis=0), cells


def _make_params(key, input_size, hidden_size):
    """Deterministic synthetic init mirroring __init__'s shapes.

    i_gate / o_gate: xavier_uniform weights, zero bias (as in weight_init).
    c_tilde: PyTorch-default-style uniform init (not re-initialized in module).
    Weights are stored transposed ((I+H, H)) relative to torch.nn.Linear.
    """
    fan_in = input_size + hidden_size
    fan_out = hidden_size
    kx = math.sqrt(6.0 / (fan_in + fan_out))          # xavier_uniform bound
    kd = 1.0 / math.sqrt(fan_in)                      # torch default bound
    ks = jax.random.split(key, 4)
    return {
        "wi": jax.random.uniform(ks[0], (fan_in, fan_out), jnp.float32, -kx, kx),
        "bi": jnp.zeros((1, fan_out), jnp.float32),
        "wo": jax.random.uniform(ks[1], (fan_in, fan_out), jnp.float32, -kx, kx),
        "bo": jnp.zeros((1, fan_out), jnp.float32),
        "wc": jax.random.uniform(ks[2], (fan_in, fan_out), jnp.float32, -kd, kd),
        "bc": jax.random.uniform(ks[3], (1, fan_out), jnp.float32, -kd, kd),
    }


if __name__ == "__main__":
    INPUT_SIZE = 16
    HIDDEN_SIZE = 32
    K = 3
    BATCH = 4
    SEQ_LEN = 8

    key = jax.random.PRNGKey(0)
    k_param, k_x, k_h, k_c, k_w = jax.random.split(key, 5)

    params = _make_params(k_param, INPUT_SIZE, HIDDEN_SIZE)

    x_seq = jax.random.normal(k_x, (SEQ_LEN, BATCH, INPUT_SIZE), jnp.float32)
    hidden_state = jax.random.normal(k_h, (BATCH, HIDDEN_SIZE), jnp.float32)
    cell_tensors = jax.random.normal(k_c, (K, BATCH, HIDDEN_SIZE), jnp.float32)
    hist_weights = jax.random.uniform(k_w, (K, HIDDEN_SIZE), jnp.float32)

    # Case 1: full sequence with provided state (time loop fused in-kernel).
    h_seq, cells_fin = mlstmf_sequence_forward(
        x_seq, (hidden_state, cell_tensors), hist_weights, params,
        k=K, hidden_size=HIDDEN_SIZE)
    jax.block_until_ready((h_seq, cells_fin))

    h_ref_seq, cells_ref_fin = _ref_sequence(
        x_seq, (hidden_state, cell_tensors), hist_weights, params,
        k=K, hidden_size=HIDDEN_SIZE)

    # Case 2: single step with hiddens_all=None (zero-initialized state).
    h1, c1 = mlstmf_cell_forward(
        x_seq[0], None, hist_weights, params, k=K, hidden_size=HIDDEN_SIZE)
    jax.block_until_ready((h1, c1))
    h1_ref, c1_ref = _ref_forward(
        x_seq[0], None, hist_weights, params, k=K, hidden_size=HIDDEN_SIZE)

    assert h_seq.shape == (SEQ_LEN, BATCH, HIDDEN_SIZE)
    assert cells_fin.shape == (K, BATCH, HIDDEN_SIZE)
    assert jnp.allclose(h_seq, h_ref_seq, atol=3e-5, rtol=3e-5)
    assert jnp.allclose(cells_fin, cells_ref_fin, atol=3e-5, rtol=3e-5)
    assert jnp.allclose(h1, h1_ref, atol=3e-5, rtol=3e-5)
    assert jnp.allclose(c1, c1_ref, atol=3e-5, rtol=3e-5)

    print("KERNEL_OK")
</pallas_src>

<mosaic_0001>
module attributes {stable_mosaic.version = 11 : i64} {
  func.func @_mlstmf_seq_kernel(%arg0: i32, %arg1: memref<1x4x16xf32, #tpu.memory_space<vmem>>, %arg2: memref<16x96xf32, #tpu.memory_space<vmem>>, %arg3: memref<32x96xf32, #tpu.memory_space<vmem>>, %arg4: memref<1x96xf32, #tpu.memory_space<vmem>>, %arg5: memref<3x1x32xf32, #tpu.memory_space<vmem>>, %arg6: memref<4x32xf32, #tpu.memory_space<vmem>>, %arg7: memref<3x4x32xf32, #tpu.memory_space<vmem>>, %arg8: memref<1x4x32xf32, #tpu.memory_space<vmem>>, %arg9: memref<3x4x32xf32, #tpu.memory_space<vmem>>, %arg10: memref<4x32xf32, #tpu.memory_space<vmem>>) attributes {dimension_semantics = [#tpu.dimension_semantics<arbitrary>], iteration_bounds = array<i64: 8>, scalar_prefetch = 0 : i64, scratch_operands = 1 : i64, tpu.core_type = #tpu.core_type<tc>, window_params = [{transform_indices = @transform_0, window_bounds = array<i64: 1, 4, 16>}, {pipeline_mode = #tpu.pipeline_mode<synchronous>, transform_indices = @transform_1, window_bounds = array<i64: 16, 96>}, {pipeline_mode = #tpu.pipeline_mode<synchronous>, transform_indices = @transform_2, window_bounds = array<i64: 32, 96>}, {pipeline_mode = #tpu.pipeline_mode<synchronous>, transform_indices = @transform_3, window_bounds = array<i64: 1, 96>}, {pipeline_mode = #tpu.pipeline_mode<synchronous>, transform_indices = @transform_4, window_bounds = array<i64: 3, 1, 32>}, {pipeline_mode = #tpu.pipeline_mode<synchronous>, transform_indices = @transform_5, window_bounds = array<i64: 4, 32>}, {pipeline_mode = #tpu.pipeline_mode<synchronous>, transform_indices = @transform_6, window_bounds = array<i64: 3, 4, 32>}, {transform_indices = @transform_7, window_bounds = array<i64: 1, 4, 32>}, {pipeline_mode = #tpu.pipeline_mode<synchronous>, transform_indices = @transform_8, window_bounds = array<i64: 3, 4, 32>}]} {
    %c0_i32 = arith.constant 0 : i32
    %0 = arith.cmpi eq, %arg0, %c0_i32 : i32
    %1 = arith.extui %0 : i1 to i32
    %c0_i32_0 = arith.constant 0 : i32
    %2 = arith.cmpi ne, %1, %c0_i32_0 : i32
    scf.if %2 {
      %c0_38 = arith.constant 0 : index
      %c0_39 = arith.constant 0 : index
      %70 = vector.load %arg6[%c0_38, %c0_39] : memref<4x32xf32, #tpu.memory_space<vmem>>, vector<4x32xf32>
      %c0_40 = arith.constant 0 : index
      %c0_41 = arith.constant 0 : index
      %71 = vector.load %arg10[%c0_40, %c0_41] : memref<4x32xf32, #tpu.memory_space<vmem>>, vector<4x32xf32>
      tpu.vector_store %arg10[%c0_40, %c0_41], %70 {strides = array<i32>} : memref<4x32xf32, #tpu.memory_space<vmem>>, vector<4x32xf32>,
      %c0_42 = arith.constant 0 : index
      %c0_43 = arith.constant 0 : index
      %c0_44 = arith.constant 0 : index
      %72 = vector.load %arg7[%c0_42, %c0_43, %c0_44] : memref<3x4x32xf32, #tpu.memory_space<vmem>>, vector<3x4x32xf32>
      %c0_45 = arith.constant 0 : index
      %c0_46 = arith.constant 0 : index
      %c0_47 = arith.constant 0 : index
      %73 = vector.load %arg9[%c0_45, %c0_46, %c0_47] : memref<3x4x32xf32, #tpu.memory_space<vmem>>, vector<3x4x32xf32>
      tpu.vector_store %arg9[%c0_45, %c0_46, %c0_47], %72 {strides = array<i32>} : memref<3x4x32xf32, #tpu.memory_space<vmem>>, vector<3x4x32xf32>,
    } else {
    }
    %c0 = arith.constant 0 : index
    %c0_1 = arith.constant 0 : index
    %c0_2 = arith.constant 0 : index
    %3 = vector.load %arg1[%c0, %c0_1, %c0_2] : memref<1x4x16xf32, #tpu.memory_space<vmem>>, vector<1x4x16xf32>
    %4 = vector.shape_cast %3 : vector<1x4x16xf32> to vector<4x16xf32>
    %c0_3 = arith.constant 0 : index
    %c0_4 = arith.constant 0 : index
    %5 = vector.load %arg10[%c0_3, %c0_4] : memref<4x32xf32, #tpu.memory_space<vmem>>, vector<4x32xf32>
    %c0_5 = arith.constant 0 : index
    %c0_6 = arith.constant 0 : index
    %6 = vector.load %arg2[%c0_5, %c0_6] : memref<16x96xf32, #tpu.memory_space<vmem>>, vector<16x96xf32>
    %cst = arith.constant dense<0.000000e+00> : vector<4x96xf32>
    %7 = tpu.matmul %4, %6, %cst {dimension_numbers = #tpu.dot_dimension_numbers<[1], [0], [0], [1], [0, 0, 1, 1], [], []>} : vector<4x16xf32>, vector<16x96xf32>, vector<4x96xf32> -> vector<4x96xf32>
    %c0_7 = arith.constant 0 : index
    %c0_8 = arith.constant 0 : index
    %8 = vector.load %arg3[%c0_7, %c0_8] : memref<32x96xf32, #tpu.memory_space<vmem>>, vector<32x96xf32>
    %cst_9 = arith.constant dense<0.000000e+00> : vector<4x96xf32>
    %9 = tpu.matmul %5, %8, %cst_9 {dimension_numbers = #tpu.dot_dimension_numbers<[1], [0], [0], [1], [0, 0, 1, 1], [], []>} : vector<4x32xf32>, vector<32x96xf32>, vector<4x96xf32> -> vector<4x96xf32>
    %10 = arith.addf %7, %9 : vector<4x96xf32>
    %c0_10 = arith.constant 0 : index
    %c0_11 = arith.constant 0 : index
    %11 = vector.load %arg4[%c0_10, %c0_11] : memref<1x96xf32, #tpu.memory_space<vmem>>, vector<1x96xf32>
    %12 = vector.broadcast %11 : vector<1x96xf32> to vector<4x96xf32>
    %13 = arith.addf %10, %12 : vector<4x96xf32>
    %14 = vector.extract_strided_slice %13 {offsets = [0, 0], sizes = [4, 32], strides = [1, 1]} : vector<4x96xf32> to vector<4x32xf32>
    %15 = arith.negf %14 : vector<4x32xf32>
    %16 = math.exp %15 : vector<4x32xf32>
    %cst_12 = arith.constant 1.000000e+00 : f32
    %17 = vector.broadcast %cst_12 : f32 to vector<4x32xf32>
    %18 = arith.addf %17, %16 : vector<4x32xf32>
    %19 = arith.divf %17, %18 : vector<4x32xf32>
    %20 = vector.extract_strided_slice %13 {offsets = [0, 32], sizes = [4, 32], strides = [1, 1]} : vector<4x96xf32> to vector<4x32xf32>
    %21 = arith.negf %20 : vector<4x32xf32>
    %22 = math.exp %21 : vector<4x32xf32>
    %cst_13 = arith.constant 1.000000e+00 : f32
    %23 = vector.broadcast %cst_13 : f32 to vector<4x32xf32>
    %24 = arith.addf %23, %22 : vector<4x32xf32>
    %25 = arith.divf %23, %24 : vector<4x32xf32>
    %26 = vector.extract_strided_slice %13 {offsets = [0, 64], sizes = [4, 32], strides = [1, 1]} : vector<4x96xf32> to vector<4x32xf32>
    %27 = math.tanh %26 : vector<4x32xf32>
    %28 = arith.mulf %19, %27 : vector<4x32xf32>
    %c0_14 = arith.constant 0 : index
    %c0_15 = arith.constant 0 : index
    %c0_16 = arith.constant 0 : index
    %29 = vector.load %arg9[%c0_14, %c0_15, %c0_16] : memref<3x4x32xf32, #tpu.memory_space<vmem>>, vector<3x4x32xf32>
    %30 = vector.extract_strided_slice %29 {offsets = [0, 0, 0], sizes = [1, 4, 32], strides = [1, 1, 1]} : vector<3x4x32xf32> to vector<1x4x32xf32>
    %31 = vector.shape_cast %30 : vector<1x4x32xf32> to vector<4x32xf32>
    %c0_17 = arith.constant 0 : index
    %c0_18 = arith.constant 0 : index
    %c0_19 = arith.constant 0 : index
    %32 = vector.load %arg5[%c0_17, %c0_18, %c0_19] : memref<3x1x32xf32, #tpu.memory_space<vmem>>, vector<1x1x32xf32>
    %33 = vector.shape_cast %32 : vector<1x1x32xf32> to vector<1x32xf32>
    %34 = vector.broadcast %33 : vector<1x32xf32> to vector<4x32xf32>
    %35 = arith.mulf %31, %34 : vector<4x32xf32>
    %36 = vector.extract_strided_slice %29 {offsets = [1, 0, 0], sizes = [1, 4, 32], strides = [1, 1, 1]} : vector<3x4x32xf32> to vector<1x4x32xf32>
    %37 = vector.shape_cast %36 : vector<1x4x32xf32> to vector<4x32xf32>
    %c1 = arith.constant 1 : index
    %c0_20 = arith.constant 0 : index
    %c0_21 = arith.constant 0 : index
    %38 = vector.load %arg5[%c1, %c0_20, %c0_21] : memref<3x1x32xf32, #tpu.memory_space<vmem>>, vector<1x1x32xf32>
    %39 = vector.shape_cast %38 : vector<1x1x32xf32> to vector<1x32xf32>
    %40 = vector.broadcast %39 : vector<1x32xf32> to vector<4x32xf32>
    %41 = arith.mulf %37, %40 : vector<4x32xf32>
    %42 = arith.addf %35, %41 : vector<4x32xf32>
    %43 = vector.extract_strided_slice %29 {offsets = [2, 0, 0], sizes = [1, 4, 32], strides = [1, 1, 1]} : vector<3x4x32xf32> to vector<1x4x32xf32>
    %44 = vector.shape_cast %43 : vector<1x4x32xf32> to vector<4x32xf32>
    %c2 = arith.constant 2 : index
    %c0_22 = arith.constant 0 : index
    %c0_23 = arith.constant 0 : index
    %45 = vector.load %arg5[%c2, %c0_22, %c0_23] : memref<3x1x32xf32, #tpu.memory_space<vmem>>, vector<1x1x32xf32>
    %46 = vector.shape_cast %45 : vector<1x1x32xf32> to vector<1x32xf32>
    %47 = vector.broadcast %46 : vector<1x32xf32> to vector<4x32xf32>
    %48 = arith.mulf %44, %47 : vector<4x32xf32>
    %49 = arith.addf %42, %48 : vector<4x32xf32>
    %50 = arith.addf %49, %28 : vector<4x32xf32>
    %51 = math.tanh %50 : vector<4x32xf32>
    %52 = arith.mulf %51, %25 : vector<4x32xf32>
    %c0_24 = arith.constant 0 : index
    %c0_25 = arith.constant 0 : index
    %c0_26 = arith.constant 0 : index
    %53 = vector.load %arg8[%c0_24, %c0_25, %c0_26] : memref<1x4x32xf32, #tpu.memory_space<vmem>>, vector<1x4x32xf32>
    %54 = vector.shape_cast %53 : vector<1x4x32xf32> to vector<4x32xf32>
    %55 = vector.shape_cast %52 : vector<4x32xf32> to vector<1x4x32xf32>
    tpu.vector_store %arg8[%c0_24, %c0_25, %c0_26], %55 {strides = array<i32>} : memref<1x4x32xf32, #tpu.memory_space<vmem>>, vector<1x4x32xf32>,
    %c0_27 = arith.constant 0 : index
    %c0_28 = arith.constant 0 : index
    %56 = vector.load %arg10[%c0_27, %c0_28] : memref<4x32xf32, #tpu.memory_space<vmem>>, vector<4x32xf32>
    tpu.vector_store %arg10[%c0_27, %c0_28], %52 {strides = array<i32>} : memref<4x32xf32, #tpu.memory_space<vmem>>, vector<4x32xf32>,
    %57 = vector.extract_strided_slice %29 {offsets = [1, 0, 0], sizes = [1, 4, 32], strides = [1, 1, 1]} : vector<3x4x32xf32> to vector<1x4x32xf32>
    %58 = vector.shape_cast %57 : vector<1x4x32xf32> to vector<4x32xf32>
    %c0_29 = arith.constant 0 : index
    %c0_30 = arith.constant 0 : index
    %c0_31 = arith.constant 0 : index
    %59 = vector.load %arg9[%c0_29, %c0_30, %c0_31] : memref<3x4x32xf32, #tpu.memory_space<vmem>>, vector<1x4x32xf32>
    %60 = vector.shape_cast %59 : vector<1x4x32xf32> to vector<4x32xf32>
    %61 = vector.shape_cast %58 : vector<4x32xf32> to vector<1x4x32xf32>
    tpu.vector_store %arg9[%c0_29, %c0_30, %c0_31], %61 {strides = array<i32>} : memref<3x4x32xf32, #tpu.memory_space<vmem>>, vector<1x4x32xf32>,
    %62 = vector.extract_strided_slice %29 {offsets = [2, 0, 0], sizes = [1, 4, 32], strides = [1, 1, 1]} : vector<3x4x32xf32> to vector<1x4x32xf32>
    %63 = vector.shape_cast %62 : vector<1x4x32xf32> to vector<4x32xf32>
    %c1_32 = arith.constant 1 : index
    %c0_33 = arith.constant 0 : index
    %c0_34 = arith.constant 0 : index
    %64 = vector.load %arg9[%c1_32, %c0_33, %c0_34] : memref<3x4x32xf32, #tpu.memory_space<vmem>>, vector<1x4x32xf32>
    %65 = vector.shape_cast %64 : vector<1x4x32xf32> to vector<4x32xf32>
    %66 = vector.shape_cast %63 : vector<4x32xf32> to vector<1x4x32xf32>
    tpu.vector_store %arg9[%c1_32, %c0_33, %c0_34], %66 {strides = array<i32>} : memref<3x4x32xf32, #tpu.memory_space<vmem>>, vector<1x4x32xf32>,
    %c2_35 = arith.constant 2 : index
    %c0_36 = arith.constant 0 : index
    %c0_37 = arith.constant 0 : index
    %67 = vector.load %arg9[%c2_35, %c0_36, %c0_37] : memref<3x4x32xf32, #tpu.memory_space<vmem>>, vector<1x4x32xf32>
    %68 = vector.shape_cast %67 : vector<1x4x32xf32> to vector<4x32xf32>
    %69 = vector.shape_cast %50 : vector<4x32xf32> to vector<1x4x32xf32>
    tpu.vector_store %arg9[%c2_35, %c0_36, %c0_37], %69 {strides = array<i32>} : memref<3x4x32xf32, #tpu.memory_space<vmem>>, vector<1x4x32xf32>,
    return
  }
  func.func @transform_0(%arg0: i32) -> (i32, i32, i32) {
    %c0_i32 = arith.constant 0 : i32
    %c0_i32_0 = arith.constant 0 : i32
    %c0_i32_1 = arith.constant 0 : i32
    return %arg0, %c0_i32, %c0_i32_0 : i32, i32, i32
  }
  func.func @transform_1(%arg0: i32) -> (i32, i32) {
    %c0_i32 = arith.constant 0 : i32
    %c0_i32_0 = arith.constant 0 : i32
    %c0_i32_1 = arith.constant 0 : i32
    return %c0_i32, %c0_i32_0 : i32, i32
  }
  func.func @transform_2(%arg0: i32) -> (i32, i32) {
    %c0_i32 = arith.constant 0 : i32
    %c0_i32_0 = arith.constant 0 : i32
    %c0_i32_1 = arith.constant 0 : i32
    return %c0_i32, %c0_i32_0 : i32, i32
  }
  func.func @transform_3(%arg0: i32) -> (i32, i32) {
    %c0_i32 = arith.constant 0 : i32
    %c0_i32_0 = arith.constant 0 : i32
    %c0_i32_1 = arith.constant 0 : i32
    return %c0_i32, %c0_i32_0 : i32, i32
  }
  func.func @transform_4(%arg0: i32) -> (i32, i32, i32) {
    %c0_i32 = arith.constant 0 : i32
    %c0_i32_0 = arith.constant 0 : i32
    %c0_i32_1 = arith.constant 0 : i32
    %c0_i32_2 = arith.constant 0 : i32
    return %c0_i32, %c0_i32_0, %c0_i32_1 : i32, i32, i32
  }
  func.func @transform_5(%arg0: i32) -> (i32, i32) {
    %c0_i32 = arith.constant 0 : i32
    %c0_i32_0 = arith.constant 0 : i32
    %c0_i32_1 = arith.constant 0 : i32
    return %c0_i32, %c0_i32_0 : i32, i32
  }
  func.func @transform_6(%arg0: i32) -> (i32, i32, i32) {
    %c0_i32 = arith.constant 0 : i32
    %c0_i32_0 = arith.constant 0 : i32
    %c0_i32_1 = arith.constant 0 : i32
    %c0_i32_2 = arith.constant 0 : i32
    return %c0_i32, %c0_i32_0, %c0_i32_1 : i32, i32, i32
  }
  func.func @transform_7(%arg0: i32) -> (i32, i32, i32) {
    %c0_i32 = arith.constant 0 : i32
    %c0_i32_0 = arith.constant 0 : i32
    %c0_i32_1 = arith.constant 0 : i32
    return %arg0, %c0_i32, %c0_i32_0 : i32, i32, i32
  }
  func.func @transform_8(%arg0: i32) -> (i32, i32, i32) {
    %c0_i32 = arith.constant 0 : i32
    %c0_i32_0 = arith.constant 0 : i32
    %c0_i32_1 = arith.constant 0 : i32
    %c0_i32_2 = arith.constant 0 : i32
    return %c0_i32, %c0_i32_0, %c0_i32_1 : i32, i32, i32
  }
}

</mosaic_0001>

<llo_original>
// kernel: tpu_custom_call.1
$region0: #{tpu_custom_call.1}
  #allocation0 [shape = 'u32[]', space=smem, size = 0x4, offset = 0x4, fixed_abs, tag = 'smem constant byte address 0x4 - core index']
  #allocation1 [shape = 'u32[72,128]{1,0:T(1,128)}', space=vmem, size = 0x9000, scoped, tag = 'internal scratch']
  #allocation2 [shape = 'f32[4,32]{1,0:T(4,128)}', space=vmem, size = 0x800, scoped, tag = 'scratch operand']
  %s0 = inlined_call_operand.hbm [shape: f32[8,4,16], index: 0, kind: input, shape index: {}]
  %s1 = inlined_call_operand.hbm [shape: f32[16,96], index: 1, kind: input, shape index: {}]
  %s2 = inlined_call_operand.hbm [shape: f32[32,96], index: 2, kind: input, shape index: {}]
  %s3 = inlined_call_operand.hbm [shape: f32[1,96], index: 3, kind: input, shape index: {}]
  %s4 = inlined_call_operand.hbm [shape: f32[3,1,32], index: 4, kind: input, shape index: {}]
  %s5 = inlined_call_operand.vmem [shape: f32[4,32], index: 5, kind: input, shape index: {}]
  %s6 = inlined_call_operand.hbm [shape: f32[3,4,32], index: 6, kind: input, shape index: {}]
  %s7 = inlined_call_operand.hbm [shape: f32[8,4,32], index: 7, kind: output, shape index: {0}]
  %s8 = inlined_call_operand.hbm [shape: f32[3,4,32], index: 8, kind: output, shape index: {1}]
  %9 = xla_tuple %s7, %s8
  %s10 = sld [smem:[#allocation0]]
  $region97: #{tpu_custom_call.1} parent=0
    _
  %s12 = ssub.s32 1, %s10
  %s13 = scalar_select 0, %s12, %s10
  $region1: #{tpu_custom_call.1} parent=0
    #allocation3 [shape = 'u8[4096]{0}', space=vmem, size = 0x1000, scoped, tag = 'input window, operand 0']
    #allocation4 [shape = 's32[2]{0}', space=sflag, size = 0x8, scoped, tag = 'scoped memory for tpu_custom_call.1']
    #allocation5 [shape = 's32[2]{0}', space=sflag, size = 0x8, scoped, tag = 'scoped memory for tpu_custom_call.1']
    #allocation6 [shape = 'u8[8192]{0}', space=vmem, size = 0x2000, scoped, tag = 'input window, operand 1, single buffered']
    #allocation7 [shape = 's32[1]{0}', space=sflag, size = 0x4, scoped, tag = 'scoped memory for tpu_custom_call.1']
    #allocation8 [shape = 'u8[16384]{0}', space=vmem, size = 0x4000, scoped, tag = 'input window, operand 2, single buffered']
    #allocation9 [shape = 'u8[512]{0}', space=vmem, size = 0x400, scoped, tag = 'input window, operand 3, single buffered']
    #allocation10 [shape = 's32[1]{0}', space=sflag, size = 0x4, scoped, tag = 'scoped memory for tpu_custom_call.1']
    #allocation11 [shape = 'u8[1536]{0}', space=vmem, size = 0x800, scoped, tag = 'input window, operand 4, single buffered']
    #allocation12 [shape = 'u8[6144]{0}', space=vmem, size = 0x1800, scoped, tag = 'input window, operand 6, single buffered']
    #allocation13 [shape = 's32[1]{0}', space=sflag, size = 0x4, scoped, tag = 'scoped memory for tpu_custom_call.1']
    #allocation14 [shape = 'u8[4096]{0}', space=vmem, size = 0x1000, scoped, tag = 'output window, operand 0']
    #allocation15 [shape = 'u8[6144]{0}', space=vmem, size = 0x1800, scoped, tag = 'output window, operand 1, single buffered']
    #allocation16 [shape = 's32[1]{0}', space=sflag, size = 0x4, scoped, tag = 'scoped memory for tpu_custom_call.1']
    %14 = vsyncpa [#allocation4], 0
    %s15 = scalar_lea.sflag [#allocation4], 1
    %16 = vsyncpa %s15, 0
    %17 = vsyncpa [#allocation7], 0
    %18 = vsyncpa [#allocation10], 0
    %19 = vsyncpa [#allocation13], 0
    %20 = vsyncpa [#allocation5], 0
    %s21 = scalar_lea.sflag [#allocation5], 1
    %22 = vsyncpa %s21, 0
    %23 = vsyncpa [#allocation16], 0
    loop: start=0, step=1, limit=10
    $region2: #{tpu_custom_call.1} parent=1 // loop_pre_header
      _
    $region3: #{tpu_custom_call.1} parent=1 // loop_header
      %s25 = sphi 0, %s29
      %p26 = scmp.ge.s32.totalorder %s25, 10
      %s35 = sphi 0, %s37
      %s38 = sphi 0, %s35
      %s39 = sphi 0, %s38
      %s55 = sphi 0, %s39
      %s59 = sphi 0, %s59
      %s61 = sphi 0, %s59
      %s62 = sphi 0, %s61
      %s76 = sphi 0, %s62
      %s80 = sphi 0, %s80
      %s82 = sphi 0, %s80
      %s83 = sphi 0, %s82
      %s97 = sphi 0, %s83
      %s101 = sphi 0, %s101
      %s103 = sphi 0, %s101
      %s104 = sphi 0, %s103
      %s118 = sphi 0, %s104
      %s122 = sphi 0, %s122
      %s124 = sphi 0, %s122
      %s125 = sphi 0, %s124
      %s139 = sphi 0, %s125
      %s143 = sphi 0, %s143
      %s145 = sphi 0, %s143
      %s146 = sphi 0, %s145
      %s160 = sphi 0, %s146
      %s164 = sphi 0, %s164
      %s166 = sphi 0, %s164
      %s167 = sphi 0, %s166
      %s181 = sphi 0, %s167
      %s187 = sphi 0, %s189
      %s190 = sphi 0, %s187
      %s191 = sphi 0, %s190
      %s207 = sphi 0, %s191
      %s211 = sphi 0, %s211
      %s213 = sphi 0, %s211
      %s214 = sphi 0, %s213
      %s228 = sphi 0, %s214
    $region4: #{tpu_custom_call.1} parent=1 // loop_header_branch
      %28 = sbr.rel (%p26) target = $region8
    $region5: #{tpu_custom_call.1} parent=1 // loop_body
      %s30 = ssub.s32 %s25, 1
      %s31 = ssub.s32 %s25, 2
      %s32 = sadd.s32 %s25, 1
      %s33 = ssub.s32 %s25, %s32
      %p34 = scmp.eq.s32.totalorder %s33, 0
      %s36 = sadd.s32 %s35, 1
      %s37 = scalar_select %p34, %s35, %s36
      %p40 = pneg %p34
      %p41 = scmp.eq.s32.totalorder %s25, 7
      %p42 = por %p40, %p41
      %p43 = scmp.ne.s32.totalorder %s35, %s38
      %p44 = scmp.eq.s32.totalorder %s25, 0
      %p45 = por %p43, %p44
      %p46 = scmp.ne.s32.totalorder %s35, %s38
      %p47 = scmp.eq.s32.totalorder %s30, 7
      %p48 = por %p46, %p47
      %p49 = scmp.ne.s32.totalorder %s38, %s39
      %p50 = scmp.eq.s32.totalorder %s30, 0
      %p51 = por %p49, %p50
      %p52 = scmp.ne.s32.totalorder %s38, %s39
      %p53 = scmp.eq.s32.totalorder %s31, 7
      %p54 = por %p52, %p53
      %p56 = scmp.ne.s32.totalorder %s39, %s55
      %p57 = scmp.eq.s32.totalorder %s31, 0
      %p58 = por %p56, %p57
      %s60 = sadd.s32 %s59, 1
      %p63 = scmp.eq.s32.totalorder %s25, 7
      %p64 = scmp.ne.s32.totalorder %s59, %s61
      %p65 = scmp.eq.s32.totalorder %s25, 0
      %p66 = por %p64, %p65
      %p67 = scmp.ne.s32.totalorder %s59, %s61
      %p68 = scmp.eq.s32.totalorder %s30, 7
      %p69 = por %p67, %p68
      %p70 = scmp.ne.s32.totalorder %s61, %s62
      %p71 = scmp.eq.s32.totalorder %s30, 0
      %p72 = por %p70, %p71
      %p73 = scmp.ne.s32.totalorder %s61, %s62
      %p74 = scmp.eq.s32.totalorder %s31, 7
      %p75 = por %p73, %p74
      %p77 = scmp.ne.s32.totalorder %s62, %s76
      %p78 = scmp.eq.s32.totalorder %s31, 0
      %p79 = por %p77, %p78
      %s81 = sadd.s32 %s80, 1
      %p84 = scmp.eq.s32.totalorder %s25, 7
      %p85 = scmp.ne.s32.totalorder %s80, %s82
      %p86 = scmp.eq.s32.totalorder %s25, 0
      %p87 = por %p85, %p86
      %p88 = scmp.ne.s32.totalorder %s80, %s82
      %p89 = scmp.eq.s32.totalorder %s30, 7
      %p90 = por %p88, %p89
      %p91 = scmp.ne.s32.totalorder %s82, %s83
      %p92 = scmp.eq.s32.totalorder %s30, 0
      %p93 = por %p91, %p92
      %p94 = scmp.ne.s32.totalorder %s82, %s83
      %p95 = scmp.eq.s32.totalorder %s31, 7
      %p96 = por %p94, %p95
      %p98 = scmp.ne.s32.totalorder %s83, %s97
      %p99 = scmp.eq.s32.totalorder %s31, 0
      %p100 = por %p98, %p99
      %s102 = sadd.s32 %s101, 1
      %p105 = scmp.eq.s32.totalorder %s25, 7
      %p106 = scmp.ne.s32.totalorder %s101, %s103
      %p107 = scmp.eq.s32.totalorder %s25, 0
      %p108 = por %p106, %p107
      %p109 = scmp.ne.s32.totalorder %s101, %s103
      %p110 = scmp.eq.s32.totalorder %s30, 7
      %p111 = por %p109, %p110
      %p112 = scmp.ne.s32.totalorder %s103, %s104
      %p113 = scmp.eq.s32.totalorder %s30, 0
      %p114 = por %p112, %p113
      %p115 = scmp.ne.s32.totalorder %s103, %s104
      %p116 = scmp.eq.s32.totalorder %s31, 7
      %p117 = por %p115, %p116
      %p119 = scmp.ne.s32.totalorder %s104, %s118
      %p120 = scmp.eq.s32.totalorder %s31, 0
      %p121 = por %p119, %p120
      %s123 = sadd.s32 %s122, 1
      %p126 = scmp.eq.s32.totalorder %s25, 7
      %p127 = scmp.ne.s32.totalorder %s122, %s124
      %p128 = scmp.eq.s32.totalorder %s25, 0
      %p129 = por %p127, %p128
      %p130 = scmp.ne.s32.totalorder %s122, %s124
      %p131 = scmp.eq.s32.totalorder %s30, 7
      %p132 = por %p130, %p131
      %p133 = scmp.ne.s32.totalorder %s124, %s125
      %p134 = scmp.eq.s32.totalorder %s30, 0
      %p135 = por %p133, %p134
      %p136 = scmp.ne.s32.totalorder %s124, %s125
      %p137 = scmp.eq.s32.totalorder %s31, 7
      %p138 = por %p136, %p137
      %p140 = scmp.ne.s32.totalorder %s125, %s139
      %p141 = scmp.eq.s32.totalorder %s31, 0
      %p142 = por %p140, %p141
      %s144 = sadd.s32 %s143, 1
      %p147 = scmp.eq.s32.totalorder %s25, 7
      %p148 = scmp.ne.s32.totalorder %s143, %s145
      %p149 = scmp.eq.s32.totalorder %s25, 0
      %p150 = por %p148, %p149
      %p151 = scmp.ne.s32.totalorder %s143, %s145
      %p152 = scmp.eq.s32.totalorder %s30, 7
      %p153 = por %p151, %p152
      %p154 = scmp.ne.s32.totalorder %s145, %s146
      %p155 = scmp.eq.s32.totalorder %s30, 0
      %p156 = por %p154, %p155
      %p157 = scmp.ne.s32.totalorder %s145, %s146
      %p158 = scmp.eq.s32.totalorder %s31, 7
      %p159 = por %p157, %p158
      %p161 = scmp.ne.s32.totalorder %s146, %s160
      %p162 = scmp.eq.s32.totalorder %s31, 0
      %p163 = por %p161, %p162
      %s165 = sadd.s32 %s164, 1
      %p168 = scmp.eq.s32.totalorder %s25, 7
      %p169 = scmp.ne.s32.totalorder %s164, %s166
      %p170 = scmp.eq.s32.totalorder %s25, 0
      %p171 = por %p169, %p170
      %p172 = scmp.ne.s32.totalorder %s164, %s166
      %p173 = scmp.eq.s32.totalorder %s30, 7
      %p174 = por %p172, %p173
      %p175 = scmp.ne.s32.totalorder %s166, %s167
      %p176 = scmp.eq.s32.totalorder %s30, 0
      %p177 = por %p175, %p176
      %p178 = scmp.ne.s32.totalorder %s166, %s167
      %p179 = scmp.eq.s32.totalorder %s31, 7
      %p180 = por %p178, %p179
      %p182 = scmp.ne.s32.totalorder %s167, %s181
      %p183 = scmp.eq.s32.totalorder %s31, 0
      %p184 = por %p182, %p183
      %s185 = ssub.s32 %s25, %s32
      %p186 = scmp.eq.s32.totalorder %s185, 0
      %s188 = sadd.s32 %s187, 1
      %s189 = scalar_select %p186, %s187, %s188
      %p192 = pneg %p186
      %p193 = scmp.eq.s32.totalorder %s25, 7
      %p194 = por %p192, %p193
      %p195 = scmp.ne.s32.totalorder %s187, %s190
      %p196 = scmp.eq.s32.totalorder %s25, 0
      %p197 = por %p195, %p196
      %p198 = scmp.ne.s32.totalorder %s187, %s190
      %p199 = scmp.eq.s32.totalorder %s30, 7
      %p200 = por %p198, %p199
      %p201 = scmp.ne.s32.totalorder %s190, %s191
      %p202 = scmp.eq.s32.totalorder %s30, 0
      %p203 = por %p201, %p202
      %p204 = scmp.ne.s32.totalorder %s190, %s191
      %p205 = scmp.eq.s32.totalorder %s31, 7
      %p206 = por %p204, %p205
      %p208 = scmp.ne.s32.totalorder %s191, %s207
      %p209 = scmp.eq.s32.totalorder %s31, 0
      %p210 = por %p208, %p209
      %s212 = sadd.s32 %s211, 1
      %p215 = scmp.eq.s32.totalorder %s25, 7
      %p216 = scmp.ne.s32.totalorder %s211, %s213
      %p217 = scmp.eq.s32.totalorder %s25, 0
      %p218 = por %p216, %p217
      %p219 = scmp.ne.s32.totalorder %s211, %s213
      %p220 = scmp.eq.s32.totalorder %s30, 7
      %p221 = por %p219, %p220
      %p222 = scmp.ne.s32.totalorder %s213, %s214
      %p223 = scmp.eq.s32.totalorder %s30, 0
      %p224 = por %p222, %p223
      %p225 = scmp.ne.s32.totalorder %s213, %s214
      %p226 = scmp.eq.s32.totalorder %s31, 7
      %p227 = por %p225, %p226
      %p229 = scmp.ne.s32.totalorder %s214, %s228
      %p230 = scmp.eq.s32.totalorder %s31, 0
      %p231 = por %p229, %p230
      %p232 = scmp.le.s32.totalorder 1, %s25
      %p233 = scmp.lt.s32.totalorder %s25, 9
      %p234 = pnand %p232, %p233
      %p235 = pneg %p234
      // Predicated region
      $region9: #{tpu_custom_call.1} parent=5 // pred_check
        _
      $region10: #{tpu_custom_call.1} parent=5 // pred_check_branch
        %237 = sbr.rel (%p234) target = $region12
      $region11: #{tpu_custom_call.1} parent=5 // pred_region
        %s238 = ssub.s32 %s25, 1
        // Predicated region
        $region13: #{tpu_custom_call.1} parent=11 // pred_check
          %p239 = pneg %p72
        $region14: #{tpu_custom_call.1} parent=11 // pred_check_branch
          %241 = sbr.rel (%p239) target = $region16
        $region15: #{tpu_custom_call.1} parent=11 // pred_region
          %243 = vsyncadd [#allocation7], 0
          %s244 = sshll.u32 %s1, 4
          %s245 = int_to_ptr.hbm [resolvable:$true] %s244
          %s246 = sshll.u32 [#allocation6], 4
          %s247 = int_to_ptr.vmem [resolvable:$true] %s246
          %252 = dma.hbm_to_vmem [thread:$0]  %s245, 256, %s247, [#allocation7], 128, 128, 8
        $region16: #{tpu_custom_call.1} parent=11 // pred_fallthru
          _
        // Predicated region
        $region17: #{tpu_custom_call.1} parent=11 // pred_check
          %p253 = pneg %p93
        $region18: #{tpu_custom_call.1} parent=11 // pred_check_branch
          %255 = sbr.rel (%p253) target = $region20
        $region19: #{tpu_custom_call.1} parent=11 // pred_region
          %257 = vsyncadd [#allocation7], 0
          %s258 = sshll.u32 %s2, 4
          %s259 = int_to_ptr.hbm [resolvable:$true] %s258
          %s260 = sshll.u32 [#allocation8], 4
          %s261 = int_to_ptr.vmem [resolvable:$true] %s260
          %266 = dma.hbm_to_vmem [thread:$0]  %s259, 512, %s261, [#allocation7], 128, 128, 8
        $region20: #{tpu_custom_call.1} parent=11 // pred_fallthru
          _
        // Predicated region
        $region21: #{tpu_custom_call.1} parent=11 // pred_check
          %p267 = pneg %p114
        $region22: #{tpu_custom_call.1} parent=11 // pred_check_branch
          %269 = sbr.rel (%p267) target = $region24
        $region23: #{tpu_custom_call.1} parent=11 // pred_region
          %271 = vsyncadd [#allocation10], 0
          %s273 = sshll.u32 %s3, 4
          %s274 = int_to_ptr.hbm [resolvable:$true] %s273
          %s275 = sshll.u32 [#allocation9], 4
          %s276 = int_to_ptr.vmem [resolvable:$true] %s275
          %278 = dma.hbm_to_vmem [thread:$0]  %s274, 16, %s276, [#allocation10]
        $region24: #{tpu_custom_call.1} parent=11 // pred_fallthru
          _
        // Predicated region
        $region25: #{tpu_custom_call.1} parent=11 // pred_check
          %p279 = pneg %p135
        $region26: #{tpu_custom_call.1} parent=11 // pred_check_branch
          %281 = sbr.rel (%p279) target = $region28
        $region27: #{tpu_custom_call.1} parent=11 // pred_region
          %283 = vsyncadd [#allocation10], 0
          %s284 = sshll.u32 %s4, 4
          %s285 = int_to_ptr.hbm [resolvable:$true] %s284
          %s286 = sshll.u32 [#allocation11], 4
          %s287 = int_to_ptr.vmem [resolvable:$true] %s286
          %292 = dma.hbm_to_vmem [thread:$0]  %s285, 48, %s287, [#allocation10], 16, 16, 1
        $region28: #{tpu_custom_call.1} parent=11 // pred_fallthru
          _
        // Predicated region
        $region29: #{tpu_custom_call.1} parent=11 // pred_check
          %p293 = pneg %p156
        $region30: #{tpu_custom_call.1} parent=11 // pred_check_branch
          %295 = sbr.rel (%p293) target = $region32
        $region31: #{tpu_custom_call.1} parent=11 // pred_region
          _
        $region32: #{tpu_custom_call.1} parent=11 // pred_fallthru
          _
        // Predicated region
        $region33: #{tpu_custom_call.1} parent=11 // pred_check
          %p296 = pneg %p177
        $region34: #{tpu_custom_call.1} parent=11 // pred_check_branch
          %298 = sbr.rel (%p296) target = $region36
        $region35: #{tpu_custom_call.1} parent=11 // pred_region
          %300 = vsyncadd [#allocation13], 0
          %s301 = sshll.u32 %s6, 4
          %s302 = int_to_ptr.hbm [resolvable:$true] %s301
          %s303 = sshll.u32 [#allocation12], 4
          %s304 = int_to_ptr.vmem [resolvable:$true] %s303
          %309 = dma.hbm_to_vmem [thread:$0]  %s302, 192, %s304, [#allocation13], 64, 64, 4
        $region36: #{tpu_custom_call.1} parent=11 // pred_fallthru
          _
      $region12: #{tpu_custom_call.1} parent=5 // pred_fallthru
        _
      %p310 = scmp.lt.s32.totalorder %s25, 8
      // Predicated region
      $region37: #{tpu_custom_call.1} parent=5 // pred_check
        %p311 = pneg %p310
      $region38: #{tpu_custom_call.1} parent=5 // pred_check_branch
        %313 = sbr.rel (%p311) target = $region40
      $region39: #{tpu_custom_call.1} parent=5 // pred_region
        // Predicated region
        $region41: #{tpu_custom_call.1} parent=39 // pred_check
          %p314 = pneg %p45
        $region42: #{tpu_custom_call.1} parent=39 // pred_check_branch
          %316 = sbr.rel (%p314) target = $region44
        $region43: #{tpu_custom_call.1} parent=39 // pred_region
          %s317 = sand.u32 %s35, 1
          %s318 = scalar_lea.sflag [#allocation4], %s317
          %s319 = sand.u32 %s35, 1
          %s320 = smul.addr %s319, 4
          %s321 = scalar_lea.vmem [#allocation3], %s320
          %323 = vsyncadd %s318, 0
          %s324 = smul.addr %s25, 4
          %s325 = scalar_lea.hbm %s0, %s324
          %s327 = sshll.u32 %s325, 4
          %s328 = int_to_ptr.hbm [resolvable:$true] %s327
          %s329 = sshll.u32 %s321, 4
          %s330 = int_to_ptr.vmem [resolvable:$true] %s329
          %332 = dma.hbm_to_vmem [thread:$0]  %s328, 64, %s330, %s318
        $region44: #{tpu_custom_call.1} parent=39 // pred_fallthru
          _
      $region40: #{tpu_custom_call.1} parent=5 // pred_fallthru
        _
      %p333 = scmp.le.s32.totalorder 1, %s25
      %p334 = scmp.lt.s32.totalorder %s25, 9
      %p335 = pnand %p333, %p334
      %p336 = pneg %p335
      // Predicated region
      $region45: #{tpu_custom_call.1} parent=5 // pred_check
        _
      $region46: #{tpu_custom_call.1} parent=5 // pred_check_branch
        %338 = sbr.rel (%p335) target = $region48
      $region47: #{tpu_custom_call.1} parent=5 // pred_region
        %s339 = ssub.s32 %s25, 1
        %s340 = sand.u32 %s38, 1
        %s341 = scalar_lea.sflag [#allocation4], %s340
        %s342 = sand.u32 %s38, 1
        %s343 = smul.addr %s342, 4
        %s344 = scalar_lea.vmem [#allocation3], %s343
        // Predicated region
        $region49: #{tpu_custom_call.1} parent=47 // pred_check
          %p345 = pneg %p51
        $region50: #{tpu_custom_call.1} parent=47 // pred_check_branch
          %347 = sbr.rel (%p345) target = $region52
        $region51: #{tpu_custom_call.1} parent=47 // pred_region
          %349 = dma.done %s341, 64
        $region52: #{tpu_custom_call.1} parent=47 // pred_fallthru
          _
        // Predicated region
        $region53: #{tpu_custom_call.1} parent=47 // pred_check
          %p350 = pneg %p72
        $region54: #{tpu_custom_call.1} parent=47 // pred_check_branch
          %352 = sbr.rel (%p350) target = $region56
        $region55: #{tpu_custom_call.1} parent=47 // pred_region
          %354 = dma.done [#allocation7], 256
        $region56: #{tpu_custom_call.1} parent=47 // pred_fallthru
          _
        // Predicated region
        $region57: #{tpu_custom_call.1} parent=47 // pred_check
          %p355 = pneg %p93
        $region58: #{tpu_custom_call.1} parent=47 // pred_check_branch
          %357 = sbr.rel (%p355) target = $region60
        $region59: #{tpu_custom_call.1} parent=47 // pred_region
          %359 = dma.done [#allocation7], 512
        $region60: #{tpu_custom_call.1} parent=47 // pred_fallthru
          _
        // Predicated region
        $region61: #{tpu_custom_call.1} parent=47 // pred_check
          %p360 = pneg %p114
        $region62: #{tpu_custom_call.1} parent=47 // pred_check_branch
          %362 = sbr.rel (%p360) target = $region64
        $region63: #{tpu_custom_call.1} parent=47 // pred_region
          %364 = dma.done [#allocation10], 16
        $region64: #{tpu_custom_call.1} parent=47 // pred_fallthru
          _
        // Predicated region
        $region65: #{tpu_custom_call.1} parent=47 // pred_check
          %p365 = pneg %p135
        $region66: #{tpu_custom_call.1} parent=47 // pred_check_branch
          %367 = sbr.rel (%p365) target = $region68
        $region67: #{tpu_custom_call.1} parent=47 // pred_region
          %369 = dma.done [#allocation10], 48
        $region68: #{tpu_custom_call.1} parent=47 // pred_fallthru
          _
        // Predicated region
        $region69: #{tpu_custom_call.1} parent=47 // pred_check
          %p370 = pneg %p177
        $region70: #{tpu_custom_call.1} parent=47 // pred_check_branch
          %372 = sbr.rel (%p370) target = $region72
        $region71: #{tpu_custom_call.1} parent=47 // pred_region
          %374 = dma.done [#allocation13], 192
        $region72: #{tpu_custom_call.1} parent=47 // pred_fallthru
          _
        %s375 = sand.u32 %s38, 1
        %s376 = scalar_lea.sflag [#allocation4], %s375
        %s377 = sand.u32 %s38, 1
        %s378 = smul.addr %s377, 4
        %s379 = scalar_lea.vmem [#allocation3], %s378
        %p380 = pneg %p51
        %p381 = pneg %p48
        %p382 = pneg %p72
        %p383 = pneg %p69
        %p384 = pneg %p93
        %p385 = pneg %p90
        %p386 = pneg %p114
        %p387 = pneg %p111
        %p388 = pneg %p135
        %p389 = pneg %p132
        %p390 = pneg %p156
        %p391 = pneg %p153
        %p392 = pneg %p177
        %p393 = pneg %p174
        %p394 = pneg %p203
        %p395 = pneg %p200
        %s396 = sand.u32 %s190, 1
        %s397 = scalar_lea.sflag [#allocation5], %s396
        %s398 = sand.u32 %s190, 1
        %s399 = smul.addr %s398, 4
        %s400 = scalar_lea.vmem [#allocation14], %s399
        %p401 = pneg %p224
        %p402 = pneg %p221
        %p403 = scmp.eq.s32.totalorder %s30, 0
        // Predicated region
        $region73: #{tpu_custom_call.1} parent=47 // pred_check
          %p404 = pneg %p403
        $region74: #{tpu_custom_call.1} parent=47 // pred_check_branch
          %406 = sbr.rel (%p404) target = $region76
        $region75: #{tpu_custom_call.1} parent=47 // pred_region
          %v407 = vld [vmem:[%s5] sm:$0xf]
          %vm408 = vcmask 257024
          %409 = vst.msk [vmem:[#allocation2] sm:$0xf] %vm408, %v407
          %v410 = vld [vmem:[#allocation12] sm:$0xf]
          %v411 = vld [vmem:[#allocation12 + $0x4] sm:$0xf]
          %v412 = vld [vmem:[#allocation12 + $0x8] sm:$0xf]
          %413 = vst.msk [vmem:[#allocation15] sm:$0xf] %vm408, %v410
          %414 = vst.msk [vmem:[#allocation15 + $0x4] sm:$0xf] %vm408, %v411
          %415 = vst.msk [vmem:[#allocation15 + $0x8] sm:$0xf] %vm408, %v412
        $region76: #{tpu_custom_call.1} parent=47 // pred_fallthru
          _
        %v416 = vld [vmem:[%s344] sm:$0xf]
        %v417 = vld [vmem:[#allocation2] sm:$0xf]
        %v418 = vld [vmem:[#allocation6] sm:$0xff]
        %v419 = vld [vmem:[#allocation6 + $0x8] sm:$0xff]
        %v420 = vld [vmem:[#allocation8] sm:$0xff]
        %v421 = vld [vmem:[#allocation8 + $0x8] sm:$0xff]
        %v422 = vld [vmem:[#allocation8 + $0x10] sm:$0xff]
        %v423 = vld [vmem:[#allocation8 + $0x18] sm:$0xff]
        %vm424 = vcmask 261120
        %v426 = vsel %vm424, %v417, 0
        %428 = vmatpush.msra.mxu0 0.0
        %429 = vmatpush.msra.mxu0 0.0
        %430 = vmatpush.msra.mxu0 0.0
        %431 = vmatpush.msra.mxu0 0.0
        %432 = vmatpush.msra.mxu0 0.0
        %433 = vmatpush.msra.mxu0 0.0
        %434 = vmatpush.msra.mxu0 0.0
        %435 = vmatpush.msra.mxu0 0.0
        %436 = vmatpush.msra.mxu0 0.0
        %437 = vmatpush.msra.mxu0 0.0
        %438 = vmatpush.msra.mxu0 0.0
        %439 = vmatpush.msra.mxu0 0.0
        %440 = vmatpush.msra.mxu0 %v423
        %441 = vmatpush.msra.mxu0 %v422
        %442 = vmatpush.msra.mxu0 %v421
        %443 = vmatpush.msra.mxu0 %v420
        %444 = vmatmul.f32.gmra.mxu0 %v426
        %v445 = vpop.f32.mrf.mxu0
        %v446 = vadd.f32 0.0, %v445
        %447 = vdwg.mxu0
        %vm448 = vcmask 130048
        %v450 = vsel %vm448, %v416, 0
        %452 = vmatpush.msra.mxu0 0.0
        %453 = vmatpush.msra.mxu0 0.0
        %454 = vmatpush.msra.mxu0 0.0
        %455 = vmatpush.msra.mxu0 0.0
        %456 = vmatpush.msra.mxu0 0.0
        %457 = vmatpush.msra.mxu0 0.0
        %458 = vmatpush.msra.mxu0 0.0
        %459 = vmatpush.msra.mxu0 0.0
        %460 = vmatpush.msra.mxu0 0.0
        %461 = vmatpush.msra.mxu0 0.0
        %462 = vmatpush.msra.mxu0 0.0
        %463 = vmatpush.msra.mxu0 0.0
        %464 = vmatpush.msra.mxu0 0.0
        %465 = vmatpush.msra.mxu0 0.0
        %466 = vmatpush.msra.mxu0 %v419
        %467 = vmatpush.msra.mxu0 %v418
        %468 = vmatmul.f32.gmra.mxu0 %v450
        %v469 = vpop.f32.mrf.mxu0
        %v470 = vadd.f32 %v446, %v469
        %471 = vdwg.mxu0
        %v472 = vld [vmem:[#allocation9] sm:$0x1]
        %v474 = vperm.slane %v472, 0
        %v476 = vadd.f32 %v470, %v474
        %v477 = vxor.u32 %v476, 2147483648
        %v478 = vmul.f32 %v477, 1.442695
        %v479 = vpow.pop %v478
        %v480 = vadd.f32 %v479, 1.0
        %v481 = vrcp.pop %v480
        %v482 = vmul.f32 %v480, %v481
        %v483 = vsub.f32 1.0, %v482
        %v484 = vmul.f32 %v481, %v483
        %v485 = vadd.f32 %v481, %v484
        %vm486 = vweird.f32 %v480
        %vm487 = vweird.f32 %v481
        %vm488 = vmor %vm486, %vm487
        %v489 = vsel %vm488, %v481, %v485
        %v490 = vand.u32 2147483647, %v480
        %vm491 = vcmp.eq.f32.partialorder %v490, 8.507059e+37
        %v492 = vand.u32 %v480, 2147483648
        %v493 = vor.u32 1.1754944e-38, %v492
        %v494 = vsel %vm491, %v493, %v489
        %v495 = vmul.f32 1.0, %v494
        %v496 = vtanh.pop %v476
        %498 = vrot.lane.b32.xlu0 %v496, 64
        %v499 = vpop.permute.xlu0 %498
        %v501 = vmul.f32 %v495, %v499
        %v502 = vld [vmem:[#allocation15] sm:$0xf]
        %v503 = vld [vmem:[#allocation15 + $0x4] sm:$0xf]
        %v504 = vld [vmem:[#allocation15 + $0x8] sm:$0xf]
        %v505 = vld [vmem:[#allocation11] sm:$0x1]
        %v507 = vperm.slane %v505, 0
        %v509 = vmul.f32 %v502, %v507
        %s510 = scalar_lea.vmem [#allocation11], 1
        %v511 = vld [vmem:[%s510] sm:$0x1]
        %v513 = vperm.slane %v511, 0
        %v515 = vmul.f32 %v503, %v513
        %v516 = vadd.f32 %v509, %v515
        %s517 = scalar_lea.vmem [#allocation11], 2
        %v518 = vld [vmem:[%s517] sm:$0x1]
        %v520 = vperm.slane %v518, 0
        %v522 = vmul.f32 %v504, %v520
        %v523 = vadd.f32 %v516, %v522
        %v524 = vadd.f32 %v523, %v501
        %v525 = vtanh.pop %v524
        %527 = vrot.lane.b32.xlu0 %v495, 96
        %v528 = vpop.permute.xlu0 %527
        %v530 = vmul.f32 %v525, %v528
        %vm531 = vcmask 257024
        %532 = vst.msk [vmem:[%s400] sm:$0xf] %vm531, %v530
        %533 = vst.msk [vmem:[#allocation2] sm:$0xf] %vm531, %v530
        %534 = vst.msk [vmem:[#allocation15] sm:$0xf] %vm531, %v503
        %s535 = scalar_lea.vmem [#allocation15], 4
        %536 = vst.msk [vmem:[%s535] sm:$0xf] %vm531, %v504
        %s537 = scalar_lea.vmem [#allocation15], 8
        %538 = vst.msk [vmem:[%s537] sm:$0xf] %vm531, %v524
        %s539 = sand.u32 %s190, 1
        %s540 = scalar_lea.sflag [#allocation5], %s539
        %s541 = sand.u32 %s190, 1
        %s542 = smul.addr %s541, 4
        %s543 = scalar_lea.vmem [#allocation14], %s542
        // Predicated region
        $region77: #{tpu_custom_call.1} parent=47 // pred_check
          %p544 = pneg %p200
        $region78: #{tpu_custom_call.1} parent=47 // pred_check_branch
          %546 = sbr.rel (%p544) target = $region80
        $region79: #{tpu_custom_call.1} parent=47 // pred_region
          %548 = vsyncadd %s540, 0
          %s549 = smul.addr %s30, 4
          %s550 = scalar_lea.hbm %s7, %s549
          %s552 = sshll.u32 %s543, 4
          %s553 = int_to_ptr.vmem [resolvable:$true] %s552
          %s554 = sshll.u32 %s550, 4
          %s555 = int_to_ptr.hbm [resolvable:$true] %s554
          %557 = dma.vmem_to_hbm [thread:$0]  %s553, 64, %s555, %s540
        $region80: #{tpu_custom_call.1} parent=47 // pred_fallthru
          _
        // Predicated region
        $region81: #{tpu_custom_call.1} parent=47 // pred_check
          %p558 = pneg %p221
        $region82: #{tpu_custom_call.1} parent=47 // pred_check_branch
          %560 = sbr.rel (%p558) target = $region84
        $region83: #{tpu_custom_call.1} parent=47 // pred_region
          %562 = vsyncadd [#allocation16], 0
          %s563 = sshll.u32 [#allocation15], 4
          %s564 = int_to_ptr.vmem [resolvable:$true] %s563
          %s565 = sshll.u32 %s8, 4
          %s566 = int_to_ptr.hbm [resolvable:$true] %s565
          %571 = dma.vmem_to_hbm [thread:$0]  %s564, 192, %s566, [#allocation16], 64, 64, 4
        $region84: #{tpu_custom_call.1} parent=47 // pred_fallthru
          _
        // Predicated region
        $region85: #{tpu_custom_call.1} parent=47 // pred_check
          %p572 = pneg %p221
        $region86: #{tpu_custom_call.1} parent=47 // pred_check_branch
          %574 = sbr.rel (%p572) target = $region88
        $region87: #{tpu_custom_call.1} parent=47 // pred_region
          %576 = dma.done [#allocation16], 192
        $region88: #{tpu_custom_call.1} parent=47 // pred_fallthru
          _
      $region48: #{tpu_custom_call.1} parent=5 // pred_fallthru
        _
      %p577 = scmp.le.s32.totalorder 2, %s25
      // Predicated region
      $region89: #{tpu_custom_call.1} parent=5 // pred_check
        %p578 = pneg %p577
      $region90: #{tpu_custom_call.1} parent=5 // pred_check_branch
        %580 = sbr.rel (%p578) target = $region92
      $region91: #{tpu_custom_call.1} parent=5 // pred_region
        %s581 = ssub.s32 %s25, 2
        // Predicated region
        $region93: #{tpu_custom_call.1} parent=91 // pred_check
          %p582 = pneg %p206
        $region94: #{tpu_custom_call.1} parent=91 // pred_check_branch
          %584 = sbr.rel (%p582) target = $region96
        $region95: #{tpu_custom_call.1} parent=91 // pred_region
          %s585 = sand.u32 %s191, 1
          %s586 = scalar_lea.sflag [#allocation5], %s585
          %s587 = sand.u32 %s191, 1
          %s588 = smul.addr %s587, 4
          %s589 = scalar_lea.vmem [#allocation14], %s588
          %591 = dma.done %s586, 64
        $region96: #{tpu_custom_call.1} parent=91 // pred_fallthru
          _
      $region92: #{tpu_custom_call.1} parent=5 // pred_fallthru
        _
    $region6: #{tpu_custom_call.1} parent=1 // loop_footer
      %s29 = sadd.s32 1, %s25
    $region7: #{tpu_custom_call.1} parent=1 // loop_footer_branch
      %24 = sbr.rel target = $region3
    $region8: #{tpu_custom_call.1} parent=1 // loop_exit
      _
    %592 = vsyncpa [#allocation4], 1
    %s593 = scalar_lea.sflag [#allocation4], 1
    %594 = vsyncpa %s593, 1
    %595 = vsyncpa [#allocation7], 1
    %596 = vsyncpa [#allocation10], 1
    %597 = vsyncpa [#allocation13], 1
    %598 = vsyncpa [#allocation5], 1
    %s599 = scalar_lea.sflag [#allocation5], 1
    %600 = vsyncpa %s599, 1
    %601 = vsyncpa [#allocation16], 1

</llo_original>
